<compile_context>
chip_gen: v7x
topology: tpu7x:2x2x1
jax: 0.10.0
libtpu: 0.0.40
codegen_flags: <defaults>
</compile_context>

<pallas_src>
import jax
import jax.numpy as jnp
from jax.experimental import pallas as pl
from jax.experimental.pallas import tpu as pltpu


def _ste_kernel(x_ref, o_ref):
    # Elementwise binarization on the VPU: (x > 0) -> {0.0, 1.0} f32.
    o_ref[...] = (x_ref[...] > 0).astype(o_ref.dtype)


_LANE_CANDIDATES = (1024, 512, 256, 128)
# Combined (input tile + f32 output tile) bytes per grid step.  Default double
# buffering keeps ~2x this resident -> ~32 MiB scoped VMEM.
_TARGET_STEP_BYTES = 16 * 1024 * 1024
_VMEM_LIMIT_BYTES = 48 * 1024 * 1024   # < v7x 64 MiB physical; safe on v5e/v6e
_MIN_GRID_STEPS = 8                    # dual-TC sharding + pipeline overlap
_SUBLANE_ALIGN = 32                    # covers f32(8)/bf16(16)/int8,fp8(32) packing


def _pick_tile_rows(rows: int, cols: int, in_itemsize: int) -> int:
    """Row-tile size: dtype-aware byte target, 32-aligned, multi-step grid."""
    if rows <= _SUBLANE_ALIGN:
        return rows  # single block; block dims == full array dims is allowed
    per_row_bytes = cols * (in_itemsize + 4)  # input row + f32 output row
    tile_from_bytes = max(
        _SUBLANE_ALIGN,
        (_TARGET_STEP_BYTES // per_row_bytes // _SUBLANE_ALIGN) * _SUBLANE_ALIGN,
    )
    # Keep >= _MIN_GRID_STEPS grid steps when the array is big enough, so both
    # v7x TensorCores get work and DMA/compute overlap exists.
    tile_from_steps = max(
        _SUBLANE_ALIGN,
        (rows // _MIN_GRID_STEPS // _SUBLANE_ALIGN) * _SUBLANE_ALIGN,
    )
    return min(tile_from_bytes, tile_from_steps)


def _run_2d(x2: jax.Array, rows: int, cols: int, tile_r: int) -> jax.Array:
    in_itemsize = jnp.dtype(x2.dtype).itemsize
    grid = (pl.cdiv(rows, tile_r),)
    return pl.pallas_call(
        _ste_kernel,
        out_shape=jax.ShapeDtypeStruct((rows, cols), jnp.float32),
        grid=grid,
        in_specs=[pl.BlockSpec((tile_r, cols), lambda i: (i, 0))],
        out_specs=pl.BlockSpec((tile_r, cols), lambda i: (i, 0)),
        compiler_params=pltpu.CompilerParams(
            dimension_semantics=("parallel",),
            vmem_limit_bytes=_VMEM_LIMIT_BYTES,
        ),
        cost_estimate=pl.CostEstimate(
            flops=rows * cols,
            transcendentals=0,
            bytes_accessed=rows * cols * (in_itemsize + 4),
        ),
    )(x2)


def ste_forward(x: jax.Array) -> jax.Array:
    """Straight-through estimator forward: (x > 0).astype(float32).

    Accepts any shape / rank / dtype; always returns float32 (like .float()).
    """
    orig_shape = x.shape
    total = x.size
    if total == 0:
        return jnp.zeros(orig_shape, jnp.float32)

    in_itemsize = jnp.dtype(x.dtype).itemsize

    if total % 128 == 0:
        # Fast path: lane-dense (rows, lane) slab, lane = widest multiple of
        # 128 dividing the flat size exactly -> no padding, unmasked stores.
        lane = next(c for c in _LANE_CANDIDATES if total % c == 0)
        rows = total // lane
        tile_r = _pick_tile_rows(rows, lane, in_itemsize)
        out = _run_2d(x.reshape(rows, lane), rows, lane, tile_r)
        return out.reshape(orig_shape)

    # Awkward flat size (not a multiple of 128).  Avoid pad + slice (each adds
    # a full extra HBM read+write pass): collapse leading dims into rows and
    # keep the trailing dim as a full-extent (masked) lane dim.  The ragged
    # last row block is masked by Pallas.
    cols = orig_shape[-1] if x.ndim >= 2 else total
    rows = total // cols
    if cols * (in_itemsize + 4) <= _TARGET_STEP_BYTES:
        tile_r = _pick_tile_rows(rows, cols, in_itemsize)
        out = _run_2d(x.reshape(rows, cols), rows, cols, tile_r)
        return out.reshape(orig_shape)

    # TODO(synk): very large awkward 1-D / huge-last-dim inputs fall back to
    # pad+slice (extra HBM passes); a masked tail kernel would avoid this.
    lane = 128
    pad = (-total) % lane
    xf = jnp.pad(x.reshape(-1), (0, pad))
    rows = (total + pad) // lane
    tile_r = _pick_tile_rows(rows, lane, in_itemsize)
    out = _run_2d(xf.reshape(rows, lane), rows, lane, tile_r)
    return out.reshape(-1)[:total].reshape(orig_shape)


if __name__ == "__main__":
    key = jax.random.PRNGKey(0)

    # Small NCHW input consistent with typical usage of the module.
    x = jax.random.normal(key, (2, 4, 16, 16), dtype=jnp.float32)
    y = ste_forward(x)
    jax.block_until_ready(y)
    y_ref = (x > 0).astype(jnp.float32)
    assert y.shape == x.shape
    assert y.dtype == jnp.float32
    assert bool(jnp.all(y == y_ref))

    # Awkward flat size (not a multiple of 128): pad-free row-collapsed path.
    x2 = jax.random.normal(jax.random.PRNGKey(1), (3, 5, 7), dtype=jnp.float32)
    y2 = ste_forward(x2)
    jax.block_until_ready(y2)
    assert bool(jnp.all(y2 == (x2 > 0).astype(jnp.float32)))

    # bf16 input (dtype-aware tile sizing); output is still f32 like .float().
    x3 = jax.random.normal(jax.random.PRNGKey(2), (4, 8, 128), dtype=jnp.bfloat16)
    y3 = ste_forward(x3)
    jax.block_until_ready(y3)
    assert y3.dtype == jnp.float32
    assert bool(jnp.all(y3 == (x3 > 0).astype(jnp.float32)))

    print("KERNEL_OK")
</pallas_src>

<mosaic_0001>
module attributes {stable_mosaic.version = 11 : i64} {
  func.func @_ste_kernel(%arg0: i32, %arg1: memref<2x1024xf32, #tpu.memory_space<vmem>>, %arg2: memref<2x1024xf32, #tpu.memory_space<vmem>>) attributes {dimension_semantics = [#tpu.dimension_semantics<parallel>], iteration_bounds = array<i64: 1>, scalar_prefetch = 0 : i64, scratch_operands = 0 : i64, tpu.core_type = #tpu.core_type<tc>, window_params = [{transform_indices = @transform_0, window_bounds = array<i64: 2, 1024>}, {transform_indices = @transform_1, window_bounds = array<i64: 2, 1024>}]} {
    %c0 = arith.constant 0 : index
    %c0_0 = arith.constant 0 : index
    %0 = vector.load %arg1[%c0, %c0_0] : memref<2x1024xf32, #tpu.memory_space<vmem>>, vector<2x1024xf32>
    %cst = arith.constant 0.000000e+00 : f32
    %1 = vector.broadcast %cst : f32 to vector<2x1024xf32>
    %2 = arith.cmpf ogt, %0, %1 : vector<2x1024xf32>
    %3 = arith.extui %2 : vector<2x1024xi1> to vector<2x1024xi32>
    %4 = arith.sitofp %3 : vector<2x1024xi32> to vector<2x1024xf32>
    %c0_1 = arith.constant 0 : index
    %c0_2 = arith.constant 0 : index
    %5 = vector.load %arg2[%c0_1, %c0_2] : memref<2x1024xf32, #tpu.memory_space<vmem>>, vector<2x1024xf32>
    tpu.vector_store %arg2[%c0_1, %c0_2], %4 {strides = array<i32>} : memref<2x1024xf32, #tpu.memory_space<vmem>>, vector<2x1024xf32>,
    return
  }
  func.func @transform_0(%arg0: i32) -> (i32, i32) {
    %c0_i32 = arith.constant 0 : i32
    %c0_i32_0 = arith.constant 0 : i32
    return %arg0, %c0_i32 : i32, i32
  }
  func.func @transform_1(%arg0: i32) -> (i32, i32) {
    %c0_i32 = arith.constant 0 : i32
    %c0_i32_0 = arith.constant 0 : i32
    return %arg0, %c0_i32 : i32, i32
  }
}

</mosaic_0001>

<llo_original>
// kernel: tpu_custom_call.1
$region0: #{tpu_custom_call.1}
  #allocation0 [shape = 'u32[]', space=smem, size = 0x4, offset = 0x4, fixed_abs, tag = 'smem constant byte address 0x4 - core index']
  #allocation1 [shape = 'u32[144,128]{1,0:T(1,128)}', space=vmem, size = 0x12000, scoped, tag = 'internal scratch']
  %s0 = inlined_call_operand.hbm [shape: f32[2,1024], index: 0, kind: input, shape index: {}]
  %s1 = inlined_call_operand.hbm [shape: f32[2,1024], index: 1, kind: output, shape index: {}]
  %s2 = sld [smem:[#allocation0]]
  $region18: #{tpu_custom_call.1} parent=0
    _
  %s4 = ssub.s32 1, %s2
  %s5 = scalar_select 0, %s4, %s2
  $region1: #{tpu_custom_call.1} parent=0
    #allocation2 [shape = 'u8[8192]{0}', space=vmem, size = 0x2000, scoped, tag = 'input window, operand 0, single buffered']
    #allocation3 [shape = 's32[1]{0}', space=sflag, size = 0x4, scoped, tag = 'scoped memory for tpu_custom_call.1']
    #allocation4 [shape = 's32[1]{0}', space=sflag, size = 0x4, scoped, tag = 'scoped memory for tpu_custom_call.1']
    #allocation5 [shape = 'u8[8192]{0}', space=vmem, size = 0x2000, scoped, tag = 'output window, operand 0, single buffered']
    %6 = vsyncpa [#allocation3], 0
    %7 = vsyncpa [#allocation4], 0
    // Predicated region
    $region2: #{tpu_custom_call.1} parent=1 // pred_check
      _
    $region3: #{tpu_custom_call.1} parent=1 // pred_check_branch
      %9 = sbr.rel (0) target = $region5
    $region4: #{tpu_custom_call.1} parent=1 // pred_region
      %s11 = ssub.s32 256, 256
      %12 = vsyncadd [#allocation3], %s11
      %s14 = sshll.u32 [#allocation2], 4
      %s15 = int_to_ptr.vmem [resolvable:$true] %s14
      %17 = dma.hbm_to_vmem [thread:$0]  %s0, 256, %s15, [#allocation3]
    $region5: #{tpu_custom_call.1} parent=1 // pred_fallthru
      _
    // Predicated region
    $region6: #{tpu_custom_call.1} parent=1 // pred_check
      _
    $region7: #{tpu_custom_call.1} parent=1 // pred_check_branch
      %19 = sbr.rel (0) target = $region9
    $region8: #{tpu_custom_call.1} parent=1 // pred_region
      %20 = dma.done [#allocation3], 256
    $region9: #{tpu_custom_call.1} parent=1 // pred_fallthru
      _
    %v21 = vld [vmem:[#allocation2] sm:$0xff]
    %v22 = vld [vmem:[#allocation2 + $0x8] sm:$0xff]
    %vm23 = vcmp.gt.f32.partialorder %v21, 0.0
    %vm24 = vcmp.gt.f32.partialorder %v22, 0.0
    %v25 = vsel %vm23, 1, 0
    %v26 = vsel %vm24, 1, 0
    %v27 = vcvt.s32.f32 %v25
    %v28 = vcvt.s32.f32 %v26
    %29 = vst [vmem:[#allocation5] sm:$0xff] %v27
    %30 = vst [vmem:[#allocation5 + $0x8] sm:$0xff] %v28
    // Predicated region
    $region10: #{tpu_custom_call.1} parent=1 // pred_check
      _
    $region11: #{tpu_custom_call.1} parent=1 // pred_check_branch
      %32 = sbr.rel (0) target = $region13
    $region12: #{tpu_custom_call.1} parent=1 // pred_region
      %s34 = ssub.s32 256, 256
      %35 = vsyncadd [#allocation4], %s34
      %s37 = sshll.u32 [#allocation5], 4
      %s38 = int_to_ptr.vmem [resolvable:$true] %s37
      %40 = dma.vmem_to_hbm [thread:$0]  %s38, 256, %s1, [#allocation4]
    $region13: #{tpu_custom_call.1} parent=1 // pred_fallthru
      _
    // Predicated region
    $region14: #{tpu_custom_call.1} parent=1 // pred_check
      _
    $region15: #{tpu_custom_call.1} parent=1 // pred_check_branch
      %42 = sbr.rel (0) target = $region17
    $region16: #{tpu_custom_call.1} parent=1 // pred_region
      %43 = dma.done [#allocation4], 256
    $region17: #{tpu_custom_call.1} parent=1 // pred_fallthru
      _
    %44 = vsyncpa [#allocation3], 1
    %45 = vsyncpa [#allocation4], 1

</llo_original>
